<compile_context>
chip_gen: v6e
topology: v6e:2x2x1
jax: 0.10.0
libtpu: 0.0.40
codegen_flags: <defaults>
</compile_context>

<pallas_src>
import jax
import jax.numpy as jnp
from jax.experimental import pallas as pl
from jax.experimental.pallas import tpu as pltpu


def _cdiv(a, b):
    return -(-a // b)


def _round_up(n, m):
    return _cdiv(n, m) * m


def _mlp_kernel(x_ref, w1_ref, b1_ref, w23_ref, b23_ref, o_ref):
    # x  : (bm, 6)  native batch-major tile (partial last block is clamped; any
    #               stale rows only feed output columns that are sliced off)
    # w1 : (40, 6)  layer1 weight in (out, in) layout
    # b1 : (40, 1)  layer1 bias
    # w23: (1, 40)  folded (layer2.W @ layer3.W)^T  -> layers 2+3 as one linear
    # b23: (1, 1)   folded bias
    # o  : (1, bm)  lane-dense output tile (batch on the 128-lane axis)
    h1 = jax.lax.dot_general(
        w1_ref[...], x_ref[...],
        dimension_numbers=(((1,), (1,)), ((), ())),        # w1 @ x^T -> (40, bm)
        preferred_element_type=jnp.float32)
    h1 = jnp.maximum(h1 + b1_ref[...], 0.0)                # bias + ReLU (VPU)
    z = jnp.dot(w23_ref[...], h1, preferred_element_type=jnp.float32) + b23_ref[...]
    o_ref[...] = jax.nn.sigmoid(z).astype(o_ref.dtype)     # (1, bm)


def prepare_params(params):
    """Fold layer2+layer3 (exact: no activation between them) and lay layer1 out
    (out, in) so the kernel can contract the feature dim of x in place."""
    w1, b1 = params["w1"], params["b1"]          # (6, 40), (1, 40)
    w2, b2 = params["w2"], params["b2"]          # (40, 40), (1, 40)
    w3, b3 = params["w3"], params["b3"]          # (40, 1), (1, 1)
    w1k = w1.T                                   # (40, 6)
    b1k = b1.T                                   # (40, 1)
    w23k = (w2 @ w3).T                           # (1, 40)
    b23k = b2 @ w3 + b3                          # (1, 1)
    return w1k, b1k, w23k, b23k


def _choose_tiling(B, bm_max):
    """Pick (grid steps, batch tile). Tiles are 128-aligned (lane-dense output);
    >= 2 even steps once B >= 256 so v7x's two TensorCores both get work."""
    b128 = _round_up(B, 128)
    n = _cdiv(b128, bm_max)
    if b128 >= 256:
        n = max(n, 2)
    if n > 1 and n % 2:
        n += 1
    bm = _round_up(_cdiv(b128, n), 128)
    n = _cdiv(B, bm)            # actual grid; last x block may be partial (clamped)
    return n, bm


def action_conditioned_ff(x, params, *, bm_max=16384):
    """x: (B, 6) float32, read in its native layout (no wrapper pad/transpose pass).
    params: dict of w1,b1,w2,b2,w3,b3 in math layout (see init_params)."""
    B, D = x.shape
    assert D == 6
    n, bm = _choose_tiling(B, bm_max)
    Bp = n * bm                                  # output columns (>= B, < B + n*128)

    w1k, b1k, w23k, b23k = prepare_params(params)

    resident = lambda a: pl.BlockSpec(a.shape, lambda i, _nd=a.ndim: (0,) * _nd)

    out = pl.pallas_call(
        _mlp_kernel,
        out_shape=jax.ShapeDtypeStruct((1, Bp), jnp.float32),
        grid_spec=pl.GridSpec(
            grid=(n,),
            in_specs=[
                pl.BlockSpec((bm, 6), lambda i: (i, 0)),   # x, native batch-major
                resident(w1k), resident(b1k),
                resident(w23k), resident(b23k),
            ],
            out_specs=pl.BlockSpec((1, bm), lambda i: (0, i)),
        ),
        compiler_params=pltpu.CompilerParams(
            dimension_semantics=("parallel",),
            vmem_limit_bytes=48 * 1024 * 1024,
        ),
        cost_estimate=pl.CostEstimate(
            flops=2 * (6 * 40 + 40) * Bp,
            transcendentals=Bp,
            bytes_accessed=24 * B + 4 * Bp + 4 * (40 * 6 + 40 + 40 + 1),
        ),
    )(x, w1k, b1k, w23k, b23k)

    return out[:, :B].reshape(B, 1)


def init_params(key):
    """Deterministic init matching nn.Linear shapes: layer1 (40,6), layer2 (40,40),
    layer3 (1,40). Stored transposed (in, out) for the math, biases as (1, out)."""
    k1, k2, k3, k4, k5, k6 = jax.random.split(key, 6)

    def unif(k, shape, fan_in):
        bound = 1.0 / jnp.sqrt(fan_in)
        return jax.random.uniform(k, shape, jnp.float32, -bound, bound)

    return {
        "w1": unif(k1, (6, 40), 6.0),
        "b1": unif(k2, (1, 40), 6.0),
        "w2": unif(k3, (40, 40), 40.0),
        "b2": unif(k4, (1, 40), 40.0),
        "w3": unif(k5, (40, 1), 40.0),
        "b3": unif(k6, (1, 1), 40.0),
    }


def _reference(x, p):
    h1 = jnp.maximum(x @ p["w1"] + p["b1"], 0.0)
    h2 = h1 @ p["w2"] + p["b2"]
    return jax.nn.sigmoid(h2 @ p["w3"] + p["b3"])


if __name__ == "__main__":
    key = jax.random.PRNGKey(0)
    kx, kp = jax.random.split(key)
    params = init_params(kp)

    # Small demo batch (consistent with the module's (B, 6) input); single partial block.
    B = 8
    x = jax.random.normal(kx, (B, 6), jnp.float32)
    out = jax.block_until_ready(action_conditioned_ff(x, params))
    ref = _reference(x, params)
    assert out.shape == (B, 1)
    assert jnp.allclose(out, ref, atol=1e-5, rtol=1e-5), (out, ref)

    # Larger batch: exercises the multi-step grid, partial last x block, pipelining.
    B2 = 1000
    x2 = jax.random.normal(jax.random.PRNGKey(1), (B2, 6), jnp.float32)
    out2 = jax.block_until_ready(action_conditioned_ff(x2, params))
    ref2 = _reference(x2, params)
    assert out2.shape == (B2, 1)
    assert jnp.allclose(out2, ref2, atol=1e-5, rtol=1e-5)

    print("KERNEL_OK")
</pallas_src>

<mosaic_0001>
module attributes {stable_mosaic.version = 11 : i64} {
  func.func @_mlp_kernel(%arg0: i32, %arg1: memref<128x6xf32, #tpu.memory_space<vmem>>, %arg2: memref<40x6xf32, #tpu.memory_space<vmem>>, %arg3: memref<40x1xf32, #tpu.memory_space<vmem>>, %arg4: memref<1x40xf32, #tpu.memory_space<vmem>>, %arg5: memref<1x1xf32, #tpu.memory_space<vmem>>, %arg6: memref<1x128xf32, #tpu.memory_space<vmem>>) attributes {dimension_semantics = [#tpu.dimension_semantics<parallel>], iteration_bounds = array<i64: 1>, scalar_prefetch = 0 : i64, scratch_operands = 0 : i64, tpu.core_type = #tpu.core_type<tc>, window_params = [{transform_indices = @transform_0, window_bounds = array<i64: 128, 6>}, {pipeline_mode = #tpu.pipeline_mode<synchronous>, transform_indices = @transform_1, window_bounds = array<i64: 40, 6>}, {pipeline_mode = #tpu.pipeline_mode<synchronous>, transform_indices = @transform_2, window_bounds = array<i64: 40, 1>}, {pipeline_mode = #tpu.pipeline_mode<synchronous>, transform_indices = @transform_3, window_bounds = array<i64: 1, 40>}, {pipeline_mode = #tpu.pipeline_mode<synchronous>, transform_indices = @transform_4, window_bounds = array<i64: 1, 1>}, {transform_indices = @transform_5, window_bounds = array<i64: 1, 128>}]} {
    %c0 = arith.constant 0 : index
    %c0_0 = arith.constant 0 : index
    %0 = vector.load %arg2[%c0, %c0_0] : memref<40x6xf32, #tpu.memory_space<vmem>>, vector<40x6xf32>
    %c0_1 = arith.constant 0 : index
    %c0_2 = arith.constant 0 : index
    %1 = vector.load %arg1[%c0_1, %c0_2] : memref<128x6xf32, #tpu.memory_space<vmem>>, vector<128x6xf32>
    %cst = arith.constant dense<0.000000e+00> : vector<40x128xf32>
    %2 = tpu.matmul %0, %1, %cst {dimension_numbers = #tpu.dot_dimension_numbers<[1], [1], [0], [0], [0, 0, 1, 0], [], []>} : vector<40x6xf32>, vector<128x6xf32>, vector<40x128xf32> -> vector<40x128xf32>
    %c0_3 = arith.constant 0 : index
    %c0_4 = arith.constant 0 : index
    %3 = vector.load %arg3[%c0_3, %c0_4] : memref<40x1xf32, #tpu.memory_space<vmem>>, vector<40x1xf32>
    %4 = vector.broadcast %3 : vector<40x1xf32> to vector<40x128xf32>
    %5 = arith.addf %2, %4 : vector<40x128xf32>
    %cst_5 = arith.constant 0.000000e+00 : f32
    %6 = vector.broadcast %cst_5 : f32 to vector<40x128xf32>
    %7 = arith.maximumf %5, %6 : vector<40x128xf32>
    %c0_6 = arith.constant 0 : index
    %c0_7 = arith.constant 0 : index
    %8 = vector.load %arg4[%c0_6, %c0_7] : memref<1x40xf32, #tpu.memory_space<vmem>>, vector<1x40xf32>
    %cst_8 = arith.constant dense<0.000000e+00> : vector<1x128xf32>
    %9 = tpu.matmul %8, %7, %cst_8 {dimension_numbers = #tpu.dot_dimension_numbers<[1], [0], [0], [1], [0, 0, 1, 1], [], []>} : vector<1x40xf32>, vector<40x128xf32>, vector<1x128xf32> -> vector<1x128xf32>
    %c0_9 = arith.constant 0 : index
    %c0_10 = arith.constant 0 : index
    %10 = vector.load %arg5[%c0_9, %c0_10] : memref<1x1xf32, #tpu.memory_space<vmem>>, vector<1x1xf32>
    %11 = vector.broadcast %10 : vector<1x1xf32> to vector<1x128xf32>
    %12 = arith.addf %9, %11 : vector<1x128xf32>
    %13 = arith.negf %12 : vector<1x128xf32>
    %14 = math.exp %13 : vector<1x128xf32>
    %cst_11 = arith.constant 1.000000e+00 : f32
    %15 = vector.broadcast %cst_11 : f32 to vector<1x128xf32>
    %16 = arith.addf %15, %14 : vector<1x128xf32>
    %17 = arith.divf %15, %16 : vector<1x128xf32>
    %c0_12 = arith.constant 0 : index
    %c0_13 = arith.constant 0 : index
    %18 = vector.load %arg6[%c0_12, %c0_13] : memref<1x128xf32, #tpu.memory_space<vmem>>, vector<1x128xf32>
    tpu.vector_store %arg6[%c0_12, %c0_13], %17 {strides = array<i32>} : memref<1x128xf32, #tpu.memory_space<vmem>>, vector<1x128xf32>,
    return
  }
  func.func @transform_0(%arg0: i32) -> (i32, i32) {
    %c0_i32 = arith.constant 0 : i32
    %c0_i32_0 = arith.constant 0 : i32
    return %arg0, %c0_i32 : i32, i32
  }
  func.func @transform_1(%arg0: i32) -> (i32, i32) {
    %c0_i32 = arith.constant 0 : i32
    %c0_i32_0 = arith.constant 0 : i32
    %c0_i32_1 = arith.constant 0 : i32
    return %c0_i32, %c0_i32_0 : i32, i32
  }
  func.func @transform_2(%arg0: i32) -> (i32, i32) {
    %c0_i32 = arith.constant 0 : i32
    %c0_i32_0 = arith.constant 0 : i32
    %c0_i32_1 = arith.constant 0 : i32
    return %c0_i32, %c0_i32_0 : i32, i32
  }
  func.func @transform_3(%arg0: i32) -> (i32, i32) {
    %c0_i32 = arith.constant 0 : i32
    %c0_i32_0 = arith.constant 0 : i32
    %c0_i32_1 = arith.constant 0 : i32
    return %c0_i32, %c0_i32_0 : i32, i32
  }
  func.func @transform_4(%arg0: i32) -> (i32, i32) {
    %c0_i32 = arith.constant 0 : i32
    %c0_i32_0 = arith.constant 0 : i32
    %c0_i32_1 = arith.constant 0 : i32
    return %c0_i32, %c0_i32_0 : i32, i32
  }
  func.func @transform_5(%arg0: i32) -> (i32, i32) {
    %c0_i32 = arith.constant 0 : i32
    %c0_i32_0 = arith.constant 0 : i32
    return %c0_i32, %arg0 : i32, i32
  }
}

</mosaic_0001>

<llo_original>
// kernel: tpu_custom_call.1
$region0: #{tpu_custom_call.1}
  #allocation0 [shape = 'u32[]', space=smem, size = 0x4, offset = 0x4, fixed_abs, tag = 'smem constant byte address 0x4 - core index']
  #allocation1 [shape = 'u32[144,128]{1,0:T(1,128)}', space=vmem, size = 0x12000, scoped, tag = 'internal scratch']
  #allocation2 [shape = 'f32[1,1]{1,0:T(1,128)S(1)}', space=vmem, size = 0x200, scoped, tag = 'scoped memory for tpu_custom_call.1']
  %s0 = inlined_call_operand.vmem [shape: f32[8,6], index: 0, kind: input, shape index: {}]
  %s1 = inlined_call_operand.vmem [shape: f32[40,6], index: 1, kind: input, shape index: {}]
  %s2 = inlined_call_operand.vmem [shape: f32[40,1], index: 2, kind: input, shape index: {}]
  %s3 = inlined_call_operand.vmem [shape: f32[1,40], index: 3, kind: input, shape index: {}]
  %s4 = inlined_call_operand.<no memory space> [shape: f32[1,1], index: 4, kind: input, shape index: {}]
  %s5 = inlined_call_operand.hbm [shape: f32[1,128], index: 5, kind: output, shape index: {}]
  %s6 = sld [smem:[#allocation0]]
  $region30: #{tpu_custom_call.1} parent=0
    _
  %s8 = ssub.s32 1, %s6
  %s9 = scalar_select 0, %s8, %s6
  %v10 = vstv %s4
  %11 = vst [vmem:[#allocation2] sm:$0x1] %v10
  $region1: #{tpu_custom_call.1} parent=0
    #allocation3 [shape = 'u8[512]{0}', space=vmem, size = 0x400, scoped, tag = 'output window, operand 0, single buffered']
    #allocation4 [shape = 's32[1]{0}', space=sflag, size = 0x4, scoped, tag = 'scoped memory for tpu_custom_call.1']
    %12 = vsyncpa [#allocation4], 0
    // Predicated region
    $region2: #{tpu_custom_call.1} parent=1 // pred_check
      _
    $region3: #{tpu_custom_call.1} parent=1 // pred_check_branch
      %14 = sbr.rel (0) target = $region5
    $region4: #{tpu_custom_call.1} parent=1 // pred_region
      _
    $region5: #{tpu_custom_call.1} parent=1 // pred_fallthru
      _
    // Predicated region
    $region6: #{tpu_custom_call.1} parent=1 // pred_check
      _
    $region7: #{tpu_custom_call.1} parent=1 // pred_check_branch
      %16 = sbr.rel (0) target = $region9
    $region8: #{tpu_custom_call.1} parent=1 // pred_region
      _
    $region9: #{tpu_custom_call.1} parent=1 // pred_fallthru
      _
    // Predicated region
    $region10: #{tpu_custom_call.1} parent=1 // pred_check
      _
    $region11: #{tpu_custom_call.1} parent=1 // pred_check_branch
      %18 = sbr.rel (0) target = $region13
    $region12: #{tpu_custom_call.1} parent=1 // pred_region
      _
    $region13: #{tpu_custom_call.1} parent=1 // pred_fallthru
      _
    // Predicated region
    $region14: #{tpu_custom_call.1} parent=1 // pred_check
      _
    $region15: #{tpu_custom_call.1} parent=1 // pred_check_branch
      %20 = sbr.rel (0) target = $region17
    $region16: #{tpu_custom_call.1} parent=1 // pred_region
      _
    $region17: #{tpu_custom_call.1} parent=1 // pred_fallthru
      _
    // Predicated region
    $region18: #{tpu_custom_call.1} parent=1 // pred_check
      _
    $region19: #{tpu_custom_call.1} parent=1 // pred_check_branch
      %22 = sbr.rel (0) target = $region21
    $region20: #{tpu_custom_call.1} parent=1 // pred_region
      _
    $region21: #{tpu_custom_call.1} parent=1 // pred_fallthru
      _
    %v23 = vld [vmem:[%s1] sm:$0xff]
    %v24 = vld [vmem:[%s1 + $0x8] sm:$0xff]
    %v25 = vld [vmem:[%s1 + $0x10] sm:$0xff]
    %v26 = vld [vmem:[%s1 + $0x18] sm:$0xff]
    %v27 = vld [vmem:[%s1 + $0x20] sm:$0xff]
    %v28 = vld [vmem:[%s0] sm:$0xff]
    %v29 = vld [vmem:[%s0 + $0x8] sm:$0xff]
    %v30 = vld [vmem:[%s0 + $0x10] sm:$0xff]
    %v31 = vld [vmem:[%s0 + $0x18] sm:$0xff]
    %v32 = vld [vmem:[%s0 + $0x20] sm:$0xff]
    %v33 = vld [vmem:[%s0 + $0x28] sm:$0xff]
    %v34 = vld [vmem:[%s0 + $0x30] sm:$0xff]
    %v35 = vld [vmem:[%s0 + $0x38] sm:$0xff]
    %v36 = vld [vmem:[%s0 + $0x40] sm:$0xff]
    %v37 = vld [vmem:[%s0 + $0x48] sm:$0xff]
    %v38 = vld [vmem:[%s0 + $0x50] sm:$0xff]
    %v39 = vld [vmem:[%s0 + $0x58] sm:$0xff]
    %v40 = vld [vmem:[%s0 + $0x60] sm:$0xff]
    %v41 = vld [vmem:[%s0 + $0x68] sm:$0xff]
    %v42 = vld [vmem:[%s0 + $0x70] sm:$0xff]
    %v43 = vld [vmem:[%s0 + $0x78] sm:$0xff]
    %v44 = vld [vmem:[%s2] sm:$0xff]
    %v45 = vld [vmem:[%s2 + $0x8] sm:$0xff]
    %v46 = vld [vmem:[%s2 + $0x10] sm:$0xff]
    %v47 = vld [vmem:[%s2 + $0x18] sm:$0xff]
    %v48 = vld [vmem:[%s2 + $0x20] sm:$0xff]
    %50 = vset.pattern.permute.xlu0 0
    %51 = vperm.xlu0 %50, %v44
    %v52 = vpop.permute.xlu0 %51
    %55 = vset.pattern.permute.xlu0 0
    %56 = vperm.xlu0 %55, %v45
    %v57 = vpop.permute.xlu0 %56
    %60 = vset.pattern.permute.xlu0 0
    %61 = vperm.xlu0 %60, %v46
    %v62 = vpop.permute.xlu0 %61
    %65 = vset.pattern.permute.xlu0 0
    %66 = vperm.xlu0 %65, %v47
    %v67 = vpop.permute.xlu0 %66
    %70 = vset.pattern.permute.xlu0 0
    %71 = vperm.xlu0 %70, %v48
    %v72 = vpop.permute.xlu0 %71
    %vm74 = vcmask 48128
    %v76 = vsel %vm74, %v23, 0
    %v79 = vsel %vm74, %v24, 0
    %v82 = vsel %vm74, %v25, 0
    %v85 = vsel %vm74, %v26, 0
    %v88 = vsel %vm74, %v27, 0
    %v91 = vsel %vm74, %v28, 0
    %v94 = vsel %vm74, %v29, 0
    %v97 = vsel %vm74, %v30, 0
    %v100 = vsel %vm74, %v31, 0
    %v103 = vsel %vm74, %v32, 0
    %v106 = vsel %vm74, %v33, 0
    %v109 = vsel %vm74, %v34, 0
    %v112 = vsel %vm74, %v35, 0
    %v115 = vsel %vm74, %v36, 0
    %v118 = vsel %vm74, %v37, 0
    %v121 = vsel %vm74, %v38, 0
    %v124 = vsel %vm74, %v39, 0
    %v127 = vsel %vm74, %v40, 0
    %v130 = vsel %vm74, %v41, 0
    %v133 = vsel %vm74, %v42, 0
    %v136 = vsel %vm74, %v43, 0
    %138 = vmatprep.subr.mxu0 0.0
    %139 = vmatpush1.xpose.msra.mxu0 %v136
    %140 = vmatprep.subr.mxu0 0.0
    %141 = vmatpush1.xpose.msra.mxu0 %v133
    %142 = vmatprep.subr.mxu0 0.0
    %143 = vmatpush1.xpose.msra.mxu0 %v130
    %144 = vmatprep.subr.mxu0 0.0
    %145 = vmatpush1.xpose.msra.mxu0 %v127
    %146 = vmatprep.subr.mxu0 0.0
    %147 = vmatpush1.xpose.msra.mxu0 %v124
    %148 = vmatprep.subr.mxu0 0.0
    %149 = vmatpush1.xpose.msra.mxu0 %v121
    %150 = vmatprep.subr.mxu0 0.0
    %151 = vmatpush1.xpose.msra.mxu0 %v118
    %152 = vmatprep.subr.mxu0 0.0
    %153 = vmatpush1.xpose.msra.mxu0 %v115
    %154 = vmatprep.subr.mxu0 0.0
    %155 = vmatpush1.xpose.msra.mxu0 %v112
    %156 = vmatprep.subr.mxu0 0.0
    %157 = vmatpush1.xpose.msra.mxu0 %v109
    %158 = vmatprep.subr.mxu0 0.0
    %159 = vmatpush1.xpose.msra.mxu0 %v106
    %160 = vmatprep.subr.mxu0 0.0
    %161 = vmatpush1.xpose.msra.mxu0 %v103
    %162 = vmatprep.subr.mxu0 0.0
    %163 = vmatpush1.xpose.msra.mxu0 %v100
    %164 = vmatprep.subr.mxu0 0.0
    %165 = vmatpush1.xpose.msra.mxu0 %v97
    %166 = vmatprep.subr.mxu0 0.0
    %167 = vmatpush1.xpose.msra.mxu0 %v94
    %168 = vmatprep.subr.mxu0 0.0
    %169 = vmatpush1.xpose.msra.mxu0 %v91
    %170 = vmatprep.subr.mxu0 0.0
    %171 = vmatpush2.xpose.msra.mxu0 0.0
    %172 = vmatprep.subr.mxu0 0.0
    %173 = vmatpush2.xpose.msra.mxu0 0.0
    %174 = vmatprep.subr.mxu0 0.0
    %175 = vmatpush2.xpose.msra.mxu0 0.0
    %176 = vmatprep.subr.mxu0 0.0
    %177 = vmatpush2.xpose.msra.mxu0 0.0
    %178 = vmatprep.subr.mxu0 0.0
    %179 = vmatpush2.xpose.msra.mxu0 0.0
    %180 = vmatprep.subr.mxu0 0.0
    %181 = vmatpush2.xpose.msra.mxu0 0.0
    %182 = vmatprep.subr.mxu0 0.0
    %183 = vmatpush2.xpose.msra.mxu0 0.0
    %184 = vmatprep.subr.mxu0 0.0
    %185 = vmatpush2.xpose.msra.mxu0 0.0
    %186 = vmatprep.subr.mxu0 0.0
    %187 = vmatpush2.xpose.msra.mxu0 0.0
    %188 = vmatprep.subr.mxu0 0.0
    %189 = vmatpush2.xpose.msra.mxu0 0.0
    %190 = vmatprep.subr.mxu0 0.0
    %191 = vmatpush2.xpose.msra.mxu0 0.0
    %192 = vmatprep.subr.mxu0 0.0
    %193 = vmatpush2.xpose.msra.mxu0 0.0
    %194 = vmatprep.subr.mxu0 0.0
    %195 = vmatpush2.xpose.msra.mxu0 0.0
    %196 = vmatprep.subr.mxu0 0.0
    %197 = vmatpush2.xpose.msra.mxu0 0.0
    %198 = vmatprep.subr.mxu0 0.0
    %199 = vmatpush2.xpose.msra.mxu0 0.0
    %200 = vmatprep.subr.mxu0 0.0
    %201 = vmatpush2.xpose.msra.mxu0 0.0
    %202 = vmatprep.mubr.f32.mxu0 0.0
    %203 = vmatmul.mubr.f32.gmra.mxu0 %v76
    %v204 = vpop.f32.mrf.mxu0
    %v205 = vadd.f32 %v52, %v204
    %v206 = vpop.f32.mrf.mxu0
    %207 = vmatprep.mubr.f32.mxu0 0.0
    %208 = vmatmul.mubr.f32.gmra.mxu0 %v79
    %v209 = vpop.f32.mrf.mxu0
    %v210 = vadd.f32 %v57, %v209
    %v211 = vpop.f32.mrf.mxu0
    %212 = vmatprep.mubr.f32.mxu0 0.0
    %213 = vmatmul.mubr.f32.gmra.mxu0 %v82
    %v214 = vpop.f32.mrf.mxu0
    %v215 = vadd.f32 %v62, %v214
    %v216 = vpop.f32.mrf.mxu0
    %217 = vmatprep.mubr.f32.mxu0 0.0
    %218 = vmatmul.mubr.f32.gmra.mxu0 %v85
    %v219 = vpop.f32.mrf.mxu0
    %v220 = vadd.f32 %v67, %v219
    %v221 = vpop.f32.mrf.mxu0
    %222 = vmatprep.mubr.f32.mxu0 0.0
    %223 = vmatmul.mubr.f32.gmra.mxu0 %v88
    %v224 = vpop.f32.mrf.mxu0
    %v225 = vadd.f32 %v72, %v224
    %v226 = vpop.f32.mrf.mxu0
    %227 = vdwg.mxu0
    %v228 = vmax.f32 %v205, 0.0
    %v229 = vmax.f32 %v210, 0.0
    %v230 = vmax.f32 %v215, 0.0
    %v231 = vmax.f32 %v220, 0.0
    %v232 = vmax.f32 %v225, 0.0
    %v233 = vld [vmem:[%s3] sm:$0x1]
    %v234 = vld [vmem:[#allocation2] sm:$0x1]
    %236 = vset.pattern.permute.xlu0 0
    %237 = vperm.xlu0 %236, %v234
    %v238 = vpop.permute.xlu0 %237
    %v240 = vlaneseq
    %v241 = vshrl.u32 %v240, 7
    %v242 = vsub.s32 0, %v241
    %v243 = vrot.slane %v238, %v242
    %vm244 = vcmask 326656
    %v246 = vsel %vm244, %v233, 0
    %248 = vmatprep.subr.mxu0 0.0
    %249 = vmatpush1.msra.mxu0 0.0
    %250 = vmatprep.subr.mxu0 0.0
    %251 = vmatpush1.msra.mxu0 0.0
    %252 = vmatprep.subr.mxu0 0.0
    %253 = vmatpush1.msra.mxu0 0.0
    %254 = vmatprep.subr.mxu0 0.0
    %255 = vmatpush1.msra.mxu0 0.0
    %256 = vmatprep.subr.mxu0 0.0
    %257 = vmatpush1.msra.mxu0 0.0
    %258 = vmatprep.subr.mxu0 0.0
    %259 = vmatpush1.msra.mxu0 0.0
    %260 = vmatprep.subr.mxu0 0.0
    %261 = vmatpush1.msra.mxu0 0.0
    %262 = vmatprep.subr.mxu0 0.0
    %263 = vmatpush1.msra.mxu0 0.0
    %264 = vmatprep.subr.mxu0 0.0
    %265 = vmatpush1.msra.mxu0 0.0
    %266 = vmatprep.subr.mxu0 0.0
    %267 = vmatpush1.msra.mxu0 0.0
    %268 = vmatprep.subr.mxu0 0.0
    %269 = vmatpush1.msra.mxu0 0.0
    %270 = vmatprep.subr.mxu0 0.0
    %271 = vmatpush1.msra.mxu0 %v232
    %272 = vmatprep.subr.mxu0 0.0
    %273 = vmatpush1.msra.mxu0 %v231
    %274 = vmatprep.subr.mxu0 0.0
    %275 = vmatpush1.msra.mxu0 %v230
    %276 = vmatprep.subr.mxu0 0.0
    %277 = vmatpush1.msra.mxu0 %v229
    %278 = vmatprep.subr.mxu0 0.0
    %279 = vmatpush1.msra.mxu0 %v228
    %280 = vmatprep.subr.mxu0 0.0
    %281 = vmatpush2.msra.mxu0 0.0
    %282 = vmatprep.subr.mxu0 0.0
    %283 = vmatpush2.msra.mxu0 0.0
    %284 = vmatprep.subr.mxu0 0.0
    %285 = vmatpush2.msra.mxu0 0.0
    %286 = vmatprep.subr.mxu0 0.0
    %287 = vmatpush2.msra.mxu0 0.0
    %288 = vmatprep.subr.mxu0 0.0
    %289 = vmatpush2.msra.mxu0 0.0
    %290 = vmatprep.subr.mxu0 0.0
    %291 = vmatpush2.msra.mxu0 0.0
    %292 = vmatprep.subr.mxu0 0.0
    %293 = vmatpush2.msra.mxu0 0.0
    %294 = vmatprep.subr.mxu0 0.0
    %295 = vmatpush2.msra.mxu0 0.0
    %296 = vmatprep.subr.mxu0 0.0
    %297 = vmatpush2.msra.mxu0 0.0
    %298 = vmatprep.subr.mxu0 0.0
    %299 = vmatpush2.msra.mxu0 0.0
    %300 = vmatprep.subr.mxu0 0.0
    %301 = vmatpush2.msra.mxu0 0.0
    %302 = vmatprep.subr.mxu0 0.0
    %303 = vmatpush2.msra.mxu0 0.0
    %304 = vmatprep.subr.mxu0 0.0
    %305 = vmatpush2.msra.mxu0 0.0
    %306 = vmatprep.subr.mxu0 0.0
    %307 = vmatpush2.msra.mxu0 0.0
    %308 = vmatprep.subr.mxu0 0.0
    %309 = vmatpush2.msra.mxu0 0.0
    %310 = vmatprep.subr.mxu0 0.0
    %311 = vmatpush2.msra.mxu0 0.0
    %312 = vmatprep.mubr.f32.mxu0 0.0
    %313 = vmatmul.mubr.f32.gmra.mxu0 %v246
    %v314 = vpop.f32.mrf.mxu0
    %v315 = vadd.f32 %v243, %v314
    %v316 = vpop.f32.mrf.mxu0
    %317 = vdwg.mxu0
    %v318 = vxor.u32 %v315, 2147483648
    %v319 = vmul.f32 %v318, 1.442695
    %v320 = vpow.pop %v319
    %v321 = vadd.f32 %v320, 1.0
    %v322 = vrcp.pop %v321
    %v323 = vmul.f32 1.0, %v322
    %324 = vst [vmem:[#allocation3] sm:$0x1] %v323
    // Predicated region
    $region22: #{tpu_custom_call.1} parent=1 // pred_check
      _
    $region23: #{tpu_custom_call.1} parent=1 // pred_check_branch
      %326 = sbr.rel (0) target = $region25
    $region24: #{tpu_custom_call.1} parent=1 // pred_region
      %s328 = ssub.s32 16, 16
      %329 = vsyncadd [#allocation4], %s328
      %s331 = sshll.u32 [#allocation3], 4
      %s332 = int_to_ptr.vmem [resolvable:$true] %s331
      %334 = dma.vmem_to_hbm [thread:$0]  %s332, 16, %s5, [#allocation4]
    $region25: #{tpu_custom_call.1} parent=1 // pred_fallthru
      _
    // Predicated region
    $region26: #{tpu_custom_call.1} parent=1 // pred_check
      _
    $region27: #{tpu_custom_call.1} parent=1 // pred_check_branch
      %336 = sbr.rel (0) target = $region29
    $region28: #{tpu_custom_call.1} parent=1 // pred_region
      %337 = dma.done [#allocation4], 16
    $region29: #{tpu_custom_call.1} parent=1 // pred_fallthru
      _
    %338 = vsyncpa [#allocation4], 1

</llo_original>
